<compile_context>
chip_gen: v7x
topology: tpu7x:2x2x1
jax: 0.10.0
libtpu: 0.0.40
codegen_flags: <defaults>
</compile_context>

<pallas_src>
import functools

import jax
import jax.numpy as jnp
from jax.experimental import pallas as pl
from jax.experimental.pallas import tpu as pltpu


def _contrastive_loss_kernel(x0_ref, x1_ref, y_ref, out_ref, acc_ref, *,
                             margin, scale, batch, tile_b, steps_per_core,
                             need_mask):
    c = pl.program_id(0)   # partial-sum / TensorCore index ("parallel")
    i = pl.program_id(1)   # reduction step within this core ("arbitrary")

    @pl.when(i == 0)
    def _init():
        acc_ref[0] = jnp.float32(0.0)

    # Upcast after load: f32 accumulation even for bf16 inputs.
    x0 = x0_ref[...].astype(jnp.float32)                      # (tb, D)
    x1 = x1_ref[...].astype(jnp.float32)
    y = y_ref[...].astype(jnp.float32)                        # (tb, 1)

    diff = x0 - x1
    dist_sq = jnp.sum(diff * diff, axis=1, keepdims=True)     # (tb, 1)
    dist = jnp.sqrt(dist_sq)
    mdist = jnp.maximum(margin - dist, 0.0)                   # clamp(min=0)
    per_sample = y * dist_sq + (1.0 - y) * (mdist * mdist)    # (tb, 1)

    if need_mask:
        # Only ragged / fully-out-of-range steps pay the mask; full tiles take
        # the cheap branch.  Padded rows use a select (never multiply) so any
        # NaN/Inf coming from Pallas-padded data is discarded, not propagated.
        start = (c * steps_per_core + i) * tile_b
        in_bounds = (start + tile_b) <= batch

        @pl.when(in_bounds)
        def _full_tile():
            acc_ref[0] += jnp.sum(per_sample)

        @pl.when(jnp.logical_not(in_bounds))
        def _tail_tile():
            row = start + jax.lax.broadcasted_iota(
                jnp.int32, per_sample.shape, 0)
            acc_ref[0] += jnp.sum(jnp.where(row < batch, per_sample, 0.0))
    else:
        acc_ref[0] += jnp.sum(per_sample)

    @pl.when(i == pl.num_programs(1) - 1)
    def _finalize():
        # One lane-dense (8,128) block per core; wrapper reads [:, 0, 0].
        out_ref[...] = jnp.full(out_ref.shape, acc_ref[0] * scale,
                                dtype=jnp.float32)


def _num_tensorcores():
    """2 on v7x-class chips (2 TensorCores/device), else 1.  Safe fallback."""
    try:
        kind = jax.devices()[0].device_kind.lower()
    except Exception:
        return 1
    return 2 if "v7" in kind else 1


def _round_down(x, m):
    return max(m, (x // m) * m)


def contrastive_loss(x0, x1, y, margin=1.0, tb=None, num_cores=None):
    """Pallas TPU implementation of ContrastiveLoss.forward.

    x0, x1: (B, D) float32 or bfloat16
    y:      (B,)   float (0/1 labels)
    returns scalar float32 loss
    """
    B, D = x0.shape
    itemsize = jnp.dtype(x0.dtype).itemsize
    # Sublane packing: 8 rows (f32), 16 (bf16), 32 (int8/fp8).
    align = {1: 32, 2: 16}.get(itemsize, 8)

    nc = int(num_cores) if num_cores is not None else _num_tensorcores()
    nc = max(1, min(nc, 2))

    rows_per_core = pl.cdiv(B, nc)

    if tb is None:
        # Per-row VMEM cost of one buffer set: two (tb, D) input rows plus one
        # row of the (tb, 1) f32 label block (lane-padded to a full (8,128)
        # tile => ~512 B/row).  ~12 MiB per set, double-buffered ~24 MiB; the
        # 40 MiB scoped-VMEM limit below leaves slack for intermediates on all
        # of v5e / v6e / v7x.
        bytes_per_row = 2 * D * itemsize + 512
        tb = max(align, (12 * 1024 * 1024) // bytes_per_row)
    tb = min(int(tb), rows_per_core)
    if tb < B:
        tb = _round_down(tb, align)
    if tb >= B:
        tb = B            # full-rows block: always satisfies the tiling rules

    steps_per_core = pl.cdiv(rows_per_core, tb)
    need_mask = (nc * steps_per_core * tb) != B

    # Clamp block indices explicitly so steps whose logical rows lie past B
    # (possible when nc=2 and the batch is ragged) stay in bounds; their
    # contribution is zeroed by the row mask above.
    last_block = max(0, pl.cdiv(B, tb) - 1)

    def row_block(c, i):
        return (jnp.minimum(c * steps_per_core + i, last_block), 0)

    kernel = functools.partial(
        _contrastive_loss_kernel,
        margin=float(margin),
        scale=0.5 / float(B),
        batch=B,
        tile_b=tb,
        steps_per_core=steps_per_core,
        need_mask=need_mask,
    )

    y2d = y.reshape(B, 1).astype(jnp.float32)

    flops = 3 * B * D + 6 * B
    bytes_accessed = 2 * B * D * itemsize + B * 4 + nc * 8 * 128 * 4

    out = pl.pallas_call(
        kernel,
        out_shape=jax.ShapeDtypeStruct((nc, 8, 128), jnp.float32),
        grid=(nc, steps_per_core),
        in_specs=[
            pl.BlockSpec((tb, D), row_block),
            pl.BlockSpec((tb, D), row_block),
            pl.BlockSpec((tb, 1), row_block),
        ],
        # One lane-dense (8,128) partial-sum block per core, written once at
        # the last reduction step of that core.
        out_specs=pl.BlockSpec((1, 8, 128), lambda c, i: (c, 0, 0)),
        scratch_shapes=[pltpu.SMEM((1,), jnp.float32)],
        compiler_params=pltpu.CompilerParams(
            dimension_semantics=("parallel", "arbitrary"),
            vmem_limit_bytes=40 * 1024 * 1024),
        cost_estimate=pl.CostEstimate(
            flops=flops, transcendentals=B, bytes_accessed=bytes_accessed),
    )(x0, x1, y2d)

    # Add per-core partials (each already scaled by 0.5/B).
    return jnp.sum(out[:, 0, 0])


def _reference(x0, x1, y, margin=1.0):
    diff = x0.astype(jnp.float32) - x1.astype(jnp.float32)
    dist_sq = jnp.sum(diff ** 2, axis=1)
    dist = jnp.sqrt(dist_sq)
    mdist = jnp.maximum(margin - dist, 0.0)
    loss = y * dist_sq + (1.0 - y) * mdist ** 2
    return jnp.sum(loss) / 2.0 / x0.shape[0]


if __name__ == "__main__":
    # Case 1: small single-tile shape, auto core count / auto tile.
    k0, k1, k2 = jax.random.split(jax.random.PRNGKey(0), 3)
    B, D = 8, 32
    x0 = jax.random.normal(k0, (B, D), dtype=jnp.float32)
    x1 = jax.random.normal(k1, (B, D), dtype=jnp.float32)
    y = jax.random.bernoulli(k2, 0.5, (B,)).astype(jnp.float32)

    loss = jax.block_until_ready(contrastive_loss(x0, x1, y, margin=1.0))
    ref = _reference(x0, x1, y, margin=1.0)
    assert jnp.allclose(loss, ref, rtol=1e-5, atol=1e-5), (loss, ref)

    # Case 2: multi-tile grid, forced 2-way core split, ragged tail
    # (exercises per-core partial sums, block-index clamping and the mask).
    k3, k4, k5 = jax.random.split(jax.random.PRNGKey(1), 3)
    B2, D2 = 20, 128
    x0b = jax.random.normal(k3, (B2, D2), dtype=jnp.float32)
    x1b = jax.random.normal(k4, (B2, D2), dtype=jnp.float32)
    yb = jax.random.bernoulli(k5, 0.5, (B2,)).astype(jnp.float32)

    loss2 = jax.block_until_ready(
        contrastive_loss(x0b, x1b, yb, margin=1.0, tb=8, num_cores=2))
    ref2 = _reference(x0b, x1b, yb, margin=1.0)
    assert jnp.allclose(loss2, ref2, rtol=1e-5, atol=1e-5), (loss2, ref2)

    # Case 3: bf16 inputs (halved HBM traffic), 16-row aligned tiles, 2-way
    # split, exact tiling (mask statically skipped).
    k6, k7, k8 = jax.random.split(jax.random.PRNGKey(2), 3)
    B3, D3 = 64, 128
    x0c = jax.random.normal(k6, (B3, D3), dtype=jnp.float32).astype(jnp.bfloat16)
    x1c = jax.random.normal(k7, (B3, D3), dtype=jnp.float32).astype(jnp.bfloat16)
    yc = jax.random.bernoulli(k8, 0.5, (B3,)).astype(jnp.float32)

    loss3 = jax.block_until_ready(
        contrastive_loss(x0c, x1c, yc, margin=1.0, tb=16, num_cores=2))
    ref3 = _reference(x0c, x1c, yc, margin=1.0)
    assert jnp.allclose(loss3, ref3, rtol=1e-4, atol=1e-5), (loss3, ref3)

    print("KERNEL_OK")
</pallas_src>

<mosaic_0001>
module attributes {stable_mosaic.version = 11 : i64} {
  func.func @_contrastive_loss_kernel(%arg0: i32, %arg1: i32, %arg2: memref<8x32xf32, #tpu.memory_space<vmem>>, %arg3: memref<8x32xf32, #tpu.memory_space<vmem>>, %arg4: memref<8x1xf32, #tpu.memory_space<vmem>>, %arg5: memref<1x8x128xf32, #tpu.memory_space<vmem>>, %arg6: memref<1xf32, #tpu.memory_space<smem>>) attributes {dimension_semantics = [#tpu.dimension_semantics<parallel>, #tpu.dimension_semantics<arbitrary>], iteration_bounds = array<i64: 1, 1>, scalar_prefetch = 0 : i64, scratch_operands = 1 : i64, tpu.core_type = #tpu.core_type<tc>, window_params = [{transform_indices = @transform_0, window_bounds = array<i64: 8, 32>}, {transform_indices = @transform_1, window_bounds = array<i64: 8, 32>}, {transform_indices = @transform_2, window_bounds = array<i64: 8, 1>}, {transform_indices = @transform_3, window_bounds = array<i64: 1, 8, 128>}]} {
    %c0_i32 = arith.constant 0 : i32
    %0 = arith.cmpi eq, %arg1, %c0_i32 : i32
    %1 = arith.extui %0 : i1 to i32
    %c0_i32_0 = arith.constant 0 : i32
    %2 = arith.cmpi ne, %1, %c0_i32_0 : i32
    scf.if %2 {
      %cst_14 = arith.constant 0.000000e+00 : f32
      %c0_15 = arith.constant 0 : index
      %31 = memref.load %arg6[%c0_15] : memref<1xf32, #tpu.memory_space<smem>>
      memref.store %cst_14, %arg6[%c0_15] : memref<1xf32, #tpu.memory_space<smem>>
    } else {
    }
    %c0 = arith.constant 0 : index
    %c0_1 = arith.constant 0 : index
    %3 = vector.load %arg2[%c0, %c0_1] : memref<8x32xf32, #tpu.memory_space<vmem>>, vector<8x32xf32>
    %c0_2 = arith.constant 0 : index
    %c0_3 = arith.constant 0 : index
    %4 = vector.load %arg3[%c0_2, %c0_3] : memref<8x32xf32, #tpu.memory_space<vmem>>, vector<8x32xf32>
    %c0_4 = arith.constant 0 : index
    %c0_5 = arith.constant 0 : index
    %5 = vector.load %arg4[%c0_4, %c0_5] : memref<8x1xf32, #tpu.memory_space<vmem>>, vector<8x1xf32>
    %6 = arith.subf %3, %4 : vector<8x32xf32>
    %7 = arith.mulf %6, %6 : vector<8x32xf32>
    %cst = arith.constant dense<0.000000e+00> : vector<8xf32>
    %8 = vector.multi_reduction <add>, %7, %cst [1] : vector<8x32xf32> to vector<8xf32>
    %9 = vector.shape_cast %8 : vector<8xf32> to vector<8x1xf32>
    %10 = math.sqrt %9 : vector<8x1xf32>
    %cst_6 = arith.constant 1.000000e+00 : f32
    %11 = vector.broadcast %cst_6 : f32 to vector<8x1xf32>
    %12 = arith.subf %11, %10 : vector<8x1xf32>
    %cst_7 = arith.constant 0.000000e+00 : f32
    %13 = vector.broadcast %cst_7 : f32 to vector<8x1xf32>
    %14 = arith.maximumf %12, %13 : vector<8x1xf32>
    %15 = arith.mulf %5, %9 : vector<8x1xf32>
    %cst_8 = arith.constant 1.000000e+00 : f32
    %16 = vector.broadcast %cst_8 : f32 to vector<8x1xf32>
    %17 = arith.subf %16, %5 : vector<8x1xf32>
    %18 = arith.mulf %14, %14 : vector<8x1xf32>
    %19 = arith.mulf %17, %18 : vector<8x1xf32>
    %20 = arith.addf %15, %19 : vector<8x1xf32>
    %c0_9 = arith.constant 0 : index
    %21 = memref.load %arg6[%c0_9] : memref<1xf32, #tpu.memory_space<smem>>
    %22 = vector.shape_cast %20 : vector<8x1xf32> to vector<1x8x1xf32>
    %cst_10 = arith.constant dense<0.000000e+00> : vector<1xf32>
    %23 = vector.multi_reduction <add>, %22, %cst_10 [1, 2] : vector<1x8x1xf32> to vector<1xf32>
    %24 = vector.shape_cast %23 : vector<1xf32> to vector<1x1x1xf32>
    %25 = vector.extract %24[0, 0, 0] : f32 from vector<1x1x1xf32>
    %26 = arith.addf %21, %25 : f32
    %c0_11 = arith.constant 0 : index
    %27 = memref.load %arg6[%c0_11] : memref<1xf32, #tpu.memory_space<smem>>
    memref.store %26, %arg6[%c0_11] : memref<1xf32, #tpu.memory_space<smem>>
    %c0_i32_12 = arith.constant 0 : i32
    %28 = arith.cmpi eq, %arg1, %c0_i32_12 : i32
    %29 = arith.extui %28 : i1 to i32
    %c0_i32_13 = arith.constant 0 : i32
    %30 = arith.cmpi ne, %29, %c0_i32_13 : i32
    scf.if %30 {
      %c0_14 = arith.constant 0 : index
      %31 = memref.load %arg6[%c0_14] : memref<1xf32, #tpu.memory_space<smem>>
      %cst_15 = arith.constant 6.250000e-02 : f32
      %32 = arith.mulf %31, %cst_15 : f32
      %33 = vector.broadcast %32 : f32 to vector<1x8x128xf32>
      %c0_16 = arith.constant 0 : index
      %c0_17 = arith.constant 0 : index
      %c0_18 = arith.constant 0 : index
      %34 = vector.load %arg5[%c0_16, %c0_17, %c0_18] : memref<1x8x128xf32, #tpu.memory_space<vmem>>, vector<1x8x128xf32>
      tpu.vector_store %arg5[%c0_16, %c0_17, %c0_18], %33 {strides = array<i32>} : memref<1x8x128xf32, #tpu.memory_space<vmem>>, vector<1x8x128xf32>,
    } else {
    }
    return
  }
  func.func @transform_0(%arg0: i32, %arg1: i32) -> (i32, i32) {
    %c1_i32 = arith.constant 1 : i32
    %0 = arith.muli %arg0, %c1_i32 : i32
    %1 = arith.addi %0, %arg1 : i32
    %c0_i32 = arith.constant 0 : i32
    %2 = arith.minsi %1, %c0_i32 : i32
    %c0_i32_0 = arith.constant 0 : i32
    %c0_i32_1 = arith.constant 0 : i32
    return %2, %c0_i32_0 : i32, i32
  }
  func.func @transform_1(%arg0: i32, %arg1: i32) -> (i32, i32) {
    %c1_i32 = arith.constant 1 : i32
    %0 = arith.muli %arg0, %c1_i32 : i32
    %1 = arith.addi %0, %arg1 : i32
    %c0_i32 = arith.constant 0 : i32
    %2 = arith.minsi %1, %c0_i32 : i32
    %c0_i32_0 = arith.constant 0 : i32
    %c0_i32_1 = arith.constant 0 : i32
    return %2, %c0_i32_0 : i32, i32
  }
  func.func @transform_2(%arg0: i32, %arg1: i32) -> (i32, i32) {
    %c1_i32 = arith.constant 1 : i32
    %0 = arith.muli %arg0, %c1_i32 : i32
    %1 = arith.addi %0, %arg1 : i32
    %c0_i32 = arith.constant 0 : i32
    %2 = arith.minsi %1, %c0_i32 : i32
    %c0_i32_0 = arith.constant 0 : i32
    %c0_i32_1 = arith.constant 0 : i32
    return %2, %c0_i32_0 : i32, i32
  }
  func.func @transform_3(%arg0: i32, %arg1: i32) -> (i32, i32, i32) {
    %c0_i32 = arith.constant 0 : i32
    %c0_i32_0 = arith.constant 0 : i32
    %c0_i32_1 = arith.constant 0 : i32
    return %arg0, %c0_i32, %c0_i32_0 : i32, i32, i32
  }
}

</mosaic_0001>

<llo_original>
// kernel: tpu_custom_call.1
$region0: #{tpu_custom_call.1}
  #allocation0 [shape = 'u32[]', space=smem, size = 0x4, offset = 0x4, fixed_abs, tag = 'smem constant byte address 0x4 - core index']
  #allocation1 [shape = 'u32[144,128]{1,0:T(1,128)}', space=vmem, size = 0x12000, scoped, tag = 'internal scratch']
  #allocation2 [shape = 'f32[1]{0:T(128)}', space=smem, size = 0x200, scoped, tag = 'scratch operand']
  %s0 = inlined_call_operand.vmem [shape: f32[8,32], index: 0, kind: input, shape index: {}]
  %s1 = inlined_call_operand.hbm [shape: f32[8,32], index: 1, kind: input, shape index: {}]
  %s2 = inlined_call_operand.vmem [shape: f32[8,1], index: 2, kind: input, shape index: {}]
  %s3 = inlined_call_operand.hbm [shape: f32[1,8,128], index: 3, kind: output, shape index: {}]
  %s4 = sld [smem:[#allocation0]]
  $region34: #{tpu_custom_call.1} parent=0
    _
  %s6 = ssub.s32 1, %s4
  %s7 = scalar_select 0, %s6, %s4
  $region1: #{tpu_custom_call.1} parent=0
    #allocation3 [shape = 'u8[4096]{0}', space=vmem, size = 0x1000, scoped, tag = 'input window, operand 1, single buffered']
    #allocation4 [shape = 's32[1]{0}', space=sflag, size = 0x4, scoped, tag = 'scoped memory for tpu_custom_call.1']
    #allocation5 [shape = 's32[1]{0}', space=sflag, size = 0x4, scoped, tag = 'scoped memory for tpu_custom_call.1']
    #allocation6 [shape = 'u8[4096]{0}', space=vmem, size = 0x1000, scoped, tag = 'output window, operand 0, single buffered']
    %8 = vsyncpa [#allocation4], 0
    %9 = vsyncpa [#allocation5], 0
    // Predicated region
    $region2: #{tpu_custom_call.1} parent=1 // pred_check
      _
    $region3: #{tpu_custom_call.1} parent=1 // pred_check_branch
      %11 = sbr.rel (0) target = $region5
    $region4: #{tpu_custom_call.1} parent=1 // pred_region
      %s12 = sadd.s32 0, 0
      %p13 = scmp.lt.s32.totalorder %s12, 0
      %s14 = scalar_select %p13, %s12, 0
      %p15 = scmp.lt.s32.totalorder %s14, 0
      %s16 = scalar_select %p15, %s14, 0
      %s17 = smul.addr %s16, 8
      %s18 = scalar_lea.vmem %s0, %s17
      %s19 = sadd.s32 0, 0
      %p20 = scmp.lt.s32.totalorder %s19, 0
      %s21 = scalar_select %p20, %s19, 0
    $region5: #{tpu_custom_call.1} parent=1 // pred_fallthru
      _
    // Predicated region
    $region6: #{tpu_custom_call.1} parent=1 // pred_check
      _
    $region7: #{tpu_custom_call.1} parent=1 // pred_check_branch
      %23 = sbr.rel (0) target = $region9
    $region8: #{tpu_custom_call.1} parent=1 // pred_region
      %s24 = sadd.s32 0, 0
      %p25 = scmp.lt.s32.totalorder %s24, 0
      %s26 = scalar_select %p25, %s24, 0
      %s28 = ssub.s32 128, 128
      %29 = vsyncadd [#allocation4], %s28
      %s30 = smul.addr %s26, 128
      %s31 = scalar_lea.hbm %s1, %s30
      %s33 = sshll.u32 [#allocation3], 4
      %s34 = int_to_ptr.vmem [resolvable:$true] %s33
      %36 = dma.hbm_to_vmem [thread:$0]  %s31, 128, %s34, [#allocation4]
    $region9: #{tpu_custom_call.1} parent=1 // pred_fallthru
      _
    // Predicated region
    $region10: #{tpu_custom_call.1} parent=1 // pred_check
      _
    $region11: #{tpu_custom_call.1} parent=1 // pred_check_branch
      %38 = sbr.rel (0) target = $region13
    $region12: #{tpu_custom_call.1} parent=1 // pred_region
      %s39 = sadd.s32 0, 0
      %p40 = scmp.lt.s32.totalorder %s39, 0
      %s41 = scalar_select %p40, %s39, 0
      %p42 = scmp.lt.s32.totalorder %s41, 0
      %s43 = scalar_select %p42, %s41, 0
      %s44 = smul.addr %s43, 8
      %s45 = scalar_lea.vmem %s2, %s44
      %s46 = sadd.s32 0, 0
      %p47 = scmp.lt.s32.totalorder %s46, 0
      %s48 = scalar_select %p47, %s46, 0
    $region13: #{tpu_custom_call.1} parent=1 // pred_fallthru
      _
    // Predicated region
    $region14: #{tpu_custom_call.1} parent=1 // pred_check
      _
    $region15: #{tpu_custom_call.1} parent=1 // pred_check_branch
      %50 = sbr.rel (0) target = $region17
    $region16: #{tpu_custom_call.1} parent=1 // pred_region
      %51 = dma.done [#allocation4], 128
    $region17: #{tpu_custom_call.1} parent=1 // pred_fallthru
      _
    %s52 = sadd.s32 0, 0
    %p53 = scmp.lt.s32.totalorder %s52, 0
    %s54 = scalar_select %p53, %s52, 0
    %p55 = scmp.lt.s32.totalorder %s54, 0
    %s56 = scalar_select %p55, %s54, 0
    %s57 = smul.addr %s56, 8
    %s58 = scalar_lea.vmem %s0, %s57
    %s59 = sadd.s32 0, 0
    %p60 = scmp.lt.s32.totalorder %s59, 0
    %s61 = scalar_select %p60, %s59, 0
    %p62 = scmp.lt.s32.totalorder %s61, 0
    %s63 = scalar_select %p62, %s61, 0
    %s64 = smul.addr %s63, 8
    %s65 = scalar_lea.vmem %s2, %s64
    %s66 = sadd.s32 0, 0
    %p67 = scmp.lt.s32.totalorder %s66, 0
    %s68 = scalar_select %p67, %s66, 0
    %p69 = scmp.lt.s32.totalorder %s68, 0
    %s70 = scalar_select %p69, %s68, 0
    %s71 = smul.addr %s70, 8
    %s72 = scalar_lea.vmem %s0, %s71
    %s73 = sadd.s32 0, 0
    %p74 = scmp.lt.s32.totalorder %s73, 0
    %s75 = scalar_select %p74, %s73, 0
    %s76 = sadd.s32 0, 0
    %p77 = scmp.lt.s32.totalorder %s76, 0
    %s78 = scalar_select %p77, %s76, 0
    %s79 = sadd.s32 0, 0
    %p80 = scmp.lt.s32.totalorder %s79, 0
    %s81 = scalar_select %p80, %s79, 0
    %p82 = scmp.lt.s32.totalorder %s81, 0
    %s83 = scalar_select %p82, %s81, 0
    %s84 = smul.addr %s83, 8
    %s85 = scalar_lea.vmem %s2, %s84
    %s86 = sadd.s32 0, 0
    %p87 = scmp.lt.s32.totalorder %s86, 0
    %s88 = scalar_select %p87, %s86, 0
    %p89 = scmp.eq.s32.totalorder 0, 0
    // Predicated region
    $region18: #{tpu_custom_call.1} parent=1 // pred_check
      %p90 = pneg %p89
    $region19: #{tpu_custom_call.1} parent=1 // pred_check_branch
      %92 = sbr.rel (%p90) target = $region21
    $region20: #{tpu_custom_call.1} parent=1 // pred_region
      %s93 = scalar_lea.smem [#allocation2], 0
      %94 = sst [smem:[%s93]] 0.0
    $region21: #{tpu_custom_call.1} parent=1 // pred_fallthru
      _
    %v95 = vld [vmem:[%s72] sm:$0xff]
    %v96 = vld [vmem:[#allocation3] sm:$0xff]
    %v97 = vld [vmem:[%s85] sm:$0xff]
    %v98 = vsub.f32 %v95, %v96
    %v99 = vmul.f32 %v98, %v98
    %vm100 = vcmask 261120
    %v101 = vsel %vm100, %v99, 0.0
    %102 = vadd.xlane.f32.xlu0 %v101
    %v103 = vpop.xlane.xlu0 %102
    %v104 = vrsqrt.pop %v103
    %v105 = vmul.f32 %v103, %v104
    %vm106 = vcmp.eq.f32.partialorder %v103, inf
    %v107 = vsel %vm106, %v103, %v105
    %vm108 = vcmp.eq.f32.partialorder %v103, 0.0
    %v109 = vand.u32 %v103, 2147483648
    %v110 = vsel %vm108, %v109, %v107
    %v111 = vsub.f32 1.0, %v110
    %v112 = vmax.f32 %v111, 0.0
    %v113 = vmul.f32 %v97, %v103
    %v114 = vsub.f32 1.0, %v97
    %v115 = vmul.f32 %v112, %v112
    %v116 = vmul.f32 %v114, %v115
    %v117 = vadd.f32 %v113, %v116
    %s118 = sld [smem:[#allocation2]]
    %vm119 = vcmask 7168
    %v120 = vsel %vm119, %v117, 0.0
    %121 = vadd.xlane.f32.xlu0 %v120
    %v122 = vpop.xlane.xlu0 %121
    %v123 = vrot.slane %v122, 4
    %v124 = vadd.f32 %v122, %v123
    %v125 = vrot.slane %v124, 2
    %v126 = vadd.f32 %v124, %v125
    %v127 = vrot.slane %v126, 1
    %v128 = vadd.f32 %v126, %v127
    %s129 = vtos %v128
    %s130 = sadd.f32 %s118, %s129
    %s131 = scalar_lea.smem [#allocation2], 0
    %132 = sst [smem:[%s131]] %s130
    // Predicated region
    $region22: #{tpu_custom_call.1} parent=1 // pred_check
      %p133 = pneg %p89
    $region23: #{tpu_custom_call.1} parent=1 // pred_check_branch
      %135 = sbr.rel (%p133) target = $region25
    $region24: #{tpu_custom_call.1} parent=1 // pred_region
      %s136 = sld [smem:[#allocation2]]
      %s137 = smul.f32 %s136, 0.0625
      %v138 = vstv %s137
      %139 = vst [vmem:[#allocation6] sm:$0xff] %v138
    $region25: #{tpu_custom_call.1} parent=1 // pred_fallthru
      _
    // Predicated region
    $region26: #{tpu_custom_call.1} parent=1 // pred_check
      _
    $region27: #{tpu_custom_call.1} parent=1 // pred_check_branch
      %141 = sbr.rel (0) target = $region29
    $region28: #{tpu_custom_call.1} parent=1 // pred_region
      %s143 = ssub.s32 128, 128
      %144 = vsyncadd [#allocation5], %s143
      %s146 = sshll.u32 [#allocation6], 4
      %s147 = int_to_ptr.vmem [resolvable:$true] %s146
      %149 = dma.vmem_to_hbm [thread:$0]  %s147, 128, %s3, [#allocation5]
    $region29: #{tpu_custom_call.1} parent=1 // pred_fallthru
      _
    // Predicated region
    $region30: #{tpu_custom_call.1} parent=1 // pred_check
      _
    $region31: #{tpu_custom_call.1} parent=1 // pred_check_branch
      %151 = sbr.rel (0) target = $region33
    $region32: #{tpu_custom_call.1} parent=1 // pred_region
      %152 = dma.done [#allocation5], 128
    $region33: #{tpu_custom_call.1} parent=1 // pred_fallthru
      _
    %153 = vsyncpa [#allocation4], 1
    %154 = vsyncpa [#allocation5], 1

</llo_original>
